<compile_context>
chip_gen: v5e
topology: v5e:2x2
jax: 0.10.0
libtpu: 0.0.40
codegen_flags: <defaults>
</compile_context>

<pallas_src>
import functools

import numpy as np
import ml_dtypes

import jax
import jax.numpy as jnp
from jax import lax
from jax.experimental import pallas as pl
from jax.experimental.pallas import tpu as pltpu

KERNEL_SIZE = 25
PAD = KERNEL_SIZE // 2  # 12


@functools.lru_cache(maxsize=None)
def _avg_filter(L: int) -> np.ndarray:
    """Moving-average matrix W (L, L) so that trend = W @ x with x of shape (L, C).

    W[t, s] = 1/count[t] if |s - t| <= PAD else 0, where
    count[t] = min(t, PAD) + min(L-1-t, PAD) + 1  (count_include_pad=False).
    Built host-side in numpy so it is a constant under jit.
    """
    idx = np.arange(L)
    in_window = np.abs(idx[:, None] - idx[None, :]) <= PAD            # (t, s)
    count = np.minimum(idx, PAD) + np.minimum(L - 1 - idx, PAD) + 1   # (t,)
    return (in_window / count[:, None]).astype(np.float32)


def _decomp_kernel(*refs, bf16x3):
    """One grid step: a (TB, L, C) batch tile in the native NLC layout.

    trend_b = W @ x_b is a single MXU matmul per batch row (divisor folded into
    W); no transposes.  bf16x3=True runs the f32 path as three bf16 matmuls
    with f32 accumulation (== lax.Precision.HIGH accuracy).
    """
    if bf16x3:
        w_hi_ref, w_lo_ref, x_ref, seasonal_ref, trend_ref = refs
        w_lo = w_lo_ref[...]
    else:
        w_hi_ref, x_ref, seasonal_ref, trend_ref = refs
        w_lo = None
    w_hi = w_hi_ref[...]
    tb = x_ref.shape[0]

    def one_batch(b, carry):
        x = x_ref[b]                                    # (L, C) native layout
        xf = x.astype(jnp.float32)
        if bf16x3:
            x_hi = xf.astype(jnp.bfloat16)
            x_lo = (xf - x_hi.astype(jnp.float32)).astype(jnp.bfloat16)
            trend = jnp.dot(w_hi, x_hi, preferred_element_type=jnp.float32)
            trend = trend + jnp.dot(w_hi, x_lo, preferred_element_type=jnp.float32)
            trend = trend + jnp.dot(w_lo, x_hi, preferred_element_type=jnp.float32)
        else:
            trend = jnp.dot(w_hi, x, preferred_element_type=jnp.float32)
        trend_ref[b] = trend.astype(trend_ref.dtype)
        seasonal_ref[b] = (xf - trend).astype(seasonal_ref.dtype)
        return carry

    lax.fori_loop(0, tb, one_batch, 0, unroll=True)


def _round_up(a, b):
    return (a + b - 1) // b * b


# VMEM sizing: stay well under a 32 MiB scoped limit (v7x has 64 MiB/TC total).
_VMEM_BUDGET = 28 << 20
_VMEM_LIMIT = 32 << 20


def _choose_batch_block(B, L, C, x_itemsize, w_bytes, batch_block):
    """Largest batch tile that (a) fits the VMEM budget with double-buffered
    x/seasonal/trend blocks plus the resident W operands and (b) leaves the
    grid with >= 2 steps when B >= 2 so v7x megacore uses both TensorCores."""
    sublane = 8 * (4 // x_itemsize)                      # f32: 8, bf16: 16
    per_b = _round_up(L, sublane) * _round_up(C, 128) * x_itemsize
    room = max(_VMEM_BUDGET - w_bytes, 6 * per_b)
    tb = min(batch_block, room // (6 * per_b), B)        # 3 arrays x 2 buffers
    if B >= 2:
        tb = min(tb, (B + 1) // 2)
    return max(1, int(tb))


@functools.partial(jax.jit, static_argnames=("batch_block",))
def series_decomposition(x, *, batch_block=8):
    """x: [B, L, C] -> (seasonal [B, L, C], trend [B, L, C]).  Native-layout I/O
    (no wrapper transposes, reshapes or pads)."""
    B, L, C = x.shape
    w32 = _avg_filter(L)

    bf16_in = x.dtype == jnp.bfloat16
    if bf16_in:
        # bf16 inputs: keep operands bf16, single MXU pass, f32 accumulate.
        w_ops = (w32.astype(ml_dtypes.bfloat16),)
    else:
        # f32 inputs: bf16x3 (== Precision.HIGH); W pre-split host-side.
        w_hi = w32.astype(ml_dtypes.bfloat16)
        w_lo = (w32 - w_hi.astype(np.float32)).astype(ml_dtypes.bfloat16)
        w_ops = (w_hi, w_lo)

    x_itemsize = jnp.dtype(x.dtype).itemsize
    # bf16 W operand(s), double-buffered by the pipeline (constant index_map ->
    # DMA'd only once; the second buffer is idle VMEM).
    w_bytes = 2 * len(w_ops) * _round_up(L, 16) * _round_up(L, 128) * 2
    tb = _choose_batch_block(B, L, C, x_itemsize, w_bytes, batch_block)

    w_spec = pl.BlockSpec((L, L), lambda i: (0, 0))           # resident weight
    x_spec = pl.BlockSpec((tb, L, C), lambda i: (i, 0, 0))    # batch tile

    # No jnp.pad: partial last block (B % tb != 0) is masked on writeback.
    grid = (pl.cdiv(B, tb),)

    kernel = functools.partial(_decomp_kernel, bf16x3=not bf16_in)
    seasonal, trend = pl.pallas_call(
        kernel,
        out_shape=(
            jax.ShapeDtypeStruct((B, L, C), x.dtype),
            jax.ShapeDtypeStruct((B, L, C), x.dtype),
        ),
        grid_spec=pltpu.PrefetchScalarGridSpec(
            num_scalar_prefetch=0,
            grid=grid,
            in_specs=[w_spec] * len(w_ops) + [x_spec],
            out_specs=(x_spec, x_spec),
        ),
        compiler_params=pltpu.CompilerParams(
            dimension_semantics=("parallel",),
            vmem_limit_bytes=_VMEM_LIMIT,
        ),
    )(*w_ops, x)
    return seasonal, trend


def _reference(x):
    """Pure-JAX reference: zero-padded window sums divided by valid counts."""
    B, L, C = x.shape
    xp = jnp.pad(x, ((0, 0), (PAD, PAD), (0, 0)))
    acc = jnp.zeros_like(x)
    for k in range(KERNEL_SIZE):
        acc = acc + xp[:, k:k + L, :]
    idx = jnp.arange(L)
    cnt = (jnp.minimum(idx, PAD) + jnp.minimum(L - 1 - idx, PAD) + 1).astype(x.dtype)
    trend = acc / cnt[None, :, None]
    return x - trend, trend


if __name__ == "__main__":
    key = jax.random.PRNGKey(0)
    B, L, C = 2, 96, 8   # small Autoformer-like shapes (seq_len=96, channels=8)
    x = jax.random.normal(key, (B, L, C), dtype=jnp.float32)

    seasonal, trend = series_decomposition(x)
    jax.block_until_ready((seasonal, trend))

    seasonal_ref, trend_ref = _reference(x)
    # f32 path uses bf16x3 matmuls (~Precision.HIGH, ~1e-6..1e-5 rel error).
    assert jnp.allclose(trend, trend_ref, atol=1e-4, rtol=1e-4)
    assert jnp.allclose(seasonal, seasonal_ref, atol=1e-4, rtol=1e-4)
    # Decomposition identity holds to f32 rounding regardless of matmul precision.
    assert jnp.allclose(seasonal + trend, x, atol=1e-5, rtol=1e-5)

    # bf16 fast path: bf16 I/O, single-pass MXU, f32 accumulate.
    xb = x.astype(jnp.bfloat16)
    seasonal_b, trend_b = series_decomposition(xb)
    jax.block_until_ready((seasonal_b, trend_b))
    assert trend_b.dtype == jnp.bfloat16 and seasonal_b.dtype == jnp.bfloat16
    assert jnp.allclose(trend_b.astype(jnp.float32), trend_ref, atol=3e-2, rtol=3e-2)
    assert jnp.allclose(
        seasonal_b.astype(jnp.float32) + trend_b.astype(jnp.float32),
        xb.astype(jnp.float32), atol=2e-2, rtol=2e-2)

    print("KERNEL_OK")
</pallas_src>

<mosaic_0001>
module attributes {stable_mosaic.version = 11 : i64} {
  func.func @_decomp_kernel(%arg0: i32, %arg1: memref<96x96xbf16, #tpu.memory_space<vmem>>, %arg2: memref<96x96xbf16, #tpu.memory_space<vmem>>, %arg3: memref<1x96x8xf32, #tpu.memory_space<vmem>>, %arg4: memref<1x96x8xf32, #tpu.memory_space<vmem>>, %arg5: memref<1x96x8xf32, #tpu.memory_space<vmem>>) attributes {dimension_semantics = [#tpu.dimension_semantics<parallel>], iteration_bounds = array<i64: 2>, scalar_prefetch = 0 : i64, scratch_operands = 0 : i64, tpu.core_type = #tpu.core_type<tc>, window_params = [{pipeline_mode = #tpu.pipeline_mode<synchronous>, transform_indices = @transform_0, window_bounds = array<i64: 96, 96>}, {pipeline_mode = #tpu.pipeline_mode<synchronous>, transform_indices = @transform_1, window_bounds = array<i64: 96, 96>}, {transform_indices = @transform_2, window_bounds = array<i64: 1, 96, 8>}, {transform_indices = @transform_3, window_bounds = array<i64: 1, 96, 8>}, {transform_indices = @transform_4, window_bounds = array<i64: 1, 96, 8>}]} {
    %c0 = arith.constant 0 : index
    %c0_0 = arith.constant 0 : index
    %0 = vector.load %arg2[%c0, %c0_0] : memref<96x96xbf16, #tpu.memory_space<vmem>>, vector<96x96xbf16>
    %c0_1 = arith.constant 0 : index
    %c0_2 = arith.constant 0 : index
    %1 = vector.load %arg1[%c0_1, %c0_2] : memref<96x96xbf16, #tpu.memory_space<vmem>>, vector<96x96xbf16>
    %c0_i32 = arith.constant 0 : i32
    %2 = arith.index_cast %c0_i32 : i32 to index
    %c0_3 = arith.constant 0 : index
    %c0_4 = arith.constant 0 : index
    %3 = vector.load %arg3[%2, %c0_3, %c0_4] : memref<1x96x8xf32, #tpu.memory_space<vmem>>, vector<1x96x8xf32>
    %4 = vector.shape_cast %3 : vector<1x96x8xf32> to vector<96x8xf32>
    %5 = arith.truncf %4 : vector<96x8xf32> to vector<96x8xbf16>
    %6 = arith.extf %5 : vector<96x8xbf16> to vector<96x8xf32>
    %7 = arith.subf %4, %6 : vector<96x8xf32>
    %8 = arith.truncf %7 : vector<96x8xf32> to vector<96x8xbf16>
    %cst = arith.constant dense<0.000000e+00> : vector<96x8xf32>
    %9 = tpu.matmul %1, %5, %cst {dimension_numbers = #tpu.dot_dimension_numbers<[1], [0], [0], [1], [0, 0, 1, 1], [], []>} : vector<96x96xbf16>, vector<96x8xbf16>, vector<96x8xf32> -> vector<96x8xf32>
    %cst_5 = arith.constant dense<0.000000e+00> : vector<96x8xf32>
    %10 = tpu.matmul %1, %8, %cst_5 {dimension_numbers = #tpu.dot_dimension_numbers<[1], [0], [0], [1], [0, 0, 1, 1], [], []>} : vector<96x96xbf16>, vector<96x8xbf16>, vector<96x8xf32> -> vector<96x8xf32>
    %11 = arith.addf %9, %10 : vector<96x8xf32>
    %cst_6 = arith.constant dense<0.000000e+00> : vector<96x8xf32>
    %12 = tpu.matmul %0, %5, %cst_6 {dimension_numbers = #tpu.dot_dimension_numbers<[1], [0], [0], [1], [0, 0, 1, 1], [], []>} : vector<96x96xbf16>, vector<96x8xbf16>, vector<96x8xf32> -> vector<96x8xf32>
    %13 = arith.addf %11, %12 : vector<96x8xf32>
    %14 = arith.index_cast %c0_i32 : i32 to index
    %c0_7 = arith.constant 0 : index
    %c0_8 = arith.constant 0 : index
    %15 = vector.load %arg5[%14, %c0_7, %c0_8] : memref<1x96x8xf32, #tpu.memory_space<vmem>>, vector<1x96x8xf32>
    %16 = vector.shape_cast %15 : vector<1x96x8xf32> to vector<96x8xf32>
    %17 = vector.shape_cast %13 : vector<96x8xf32> to vector<1x96x8xf32>
    tpu.vector_store %arg5[%14, %c0_7, %c0_8], %17 {strides = array<i32>} : memref<1x96x8xf32, #tpu.memory_space<vmem>>, vector<1x96x8xf32>,
    %18 = arith.subf %4, %13 : vector<96x8xf32>
    %19 = arith.index_cast %c0_i32 : i32 to index
    %c0_9 = arith.constant 0 : index
    %c0_10 = arith.constant 0 : index
    %20 = vector.load %arg4[%19, %c0_9, %c0_10] : memref<1x96x8xf32, #tpu.memory_space<vmem>>, vector<1x96x8xf32>
    %21 = vector.shape_cast %20 : vector<1x96x8xf32> to vector<96x8xf32>
    %22 = vector.shape_cast %18 : vector<96x8xf32> to vector<1x96x8xf32>
    tpu.vector_store %arg4[%19, %c0_9, %c0_10], %22 {strides = array<i32>} : memref<1x96x8xf32, #tpu.memory_space<vmem>>, vector<1x96x8xf32>,
    %c1_i32 = arith.constant 1 : i32
    return
  }
  func.func @transform_0(%arg0: i32) -> (i32, i32) {
    %c0_i32 = arith.constant 0 : i32
    %c0_i32_0 = arith.constant 0 : i32
    %c0_i32_1 = arith.constant 0 : i32
    return %c0_i32, %c0_i32_0 : i32, i32
  }
  func.func @transform_1(%arg0: i32) -> (i32, i32) {
    %c0_i32 = arith.constant 0 : i32
    %c0_i32_0 = arith.constant 0 : i32
    %c0_i32_1 = arith.constant 0 : i32
    return %c0_i32, %c0_i32_0 : i32, i32
  }
  func.func @transform_2(%arg0: i32) -> (i32, i32, i32) {
    %c0_i32 = arith.constant 0 : i32
    %c0_i32_0 = arith.constant 0 : i32
    %c0_i32_1 = arith.constant 0 : i32
    return %arg0, %c0_i32, %c0_i32_0 : i32, i32, i32
  }
  func.func @transform_3(%arg0: i32) -> (i32, i32, i32) {
    %c0_i32 = arith.constant 0 : i32
    %c0_i32_0 = arith.constant 0 : i32
    %c0_i32_1 = arith.constant 0 : i32
    return %arg0, %c0_i32, %c0_i32_0 : i32, i32, i32
  }
  func.func @transform_4(%arg0: i32) -> (i32, i32, i32) {
    %c0_i32 = arith.constant 0 : i32
    %c0_i32_0 = arith.constant 0 : i32
    %c0_i32_1 = arith.constant 0 : i32
    return %arg0, %c0_i32, %c0_i32_0 : i32, i32, i32
  }
}

</mosaic_0001>

<llo_original>
// kernel: series_decomposition.1
$region0: #{series_decomposition.1}
  #allocation0 [shape = 'u32[]', space=smem, size = 0x4, offset = 0x4, fixed_abs, tag = 'smem constant byte address 0x4 - core index']
  #allocation1 [shape = 'u32[72,128]{1,0:T(1,128)}', space=vmem, size = 0x9000, scoped, tag = 'internal scratch']
  %s0 = inlined_call_operand.vmem [shape: bf16[96,96], index: 0, kind: input, shape index: {}]
  %s1 = inlined_call_operand.vmem [shape: bf16[96,96], index: 1, kind: input, shape index: {}]
  %s2 = inlined_call_operand.vmem [shape: f32[2,96,8], index: 2, kind: input, shape index: {}]
  %s3 = inlined_call_operand.vmem [shape: f32[2,96,8], index: 3, kind: output, shape index: {0}]
  %s4 = inlined_call_operand.vmem [shape: f32[2,96,8], index: 4, kind: output, shape index: {1}]
  %5 = xla_tuple %s3, %s4
  %s6 = sld [smem:[#allocation0]]
  $region53: #{series_decomposition.1} parent=0
    _
  %s8 = ssub.s32 1, %s6
  %s9 = scalar_select 0, %s8, %s6
  loop: start=0, step=1, limit=4
  $region2: #{series_decomposition.1} parent=0 // loop_pre_header
    _
  $region3: #{series_decomposition.1} parent=0 // loop_header
    %s11 = sphi 0, %s15
    %p12 = scmp.ge.s32.totalorder %s11, 4
    %s19 = sphi 0, %s19
    %s21 = sphi 0, %s19
    %s22 = sphi 0, %s21
    %s36 = sphi 0, %s22
    %s40 = sphi 0, %s40
    %s42 = sphi 0, %s40
    %s43 = sphi 0, %s42
    %s57 = sphi 0, %s43
    %s63 = sphi 0, %s65
    %s66 = sphi 0, %s63
    %s67 = sphi 0, %s66
    %s83 = sphi 0, %s67
    %s89 = sphi 0, %s91
    %s92 = sphi 0, %s89
    %s93 = sphi 0, %s92
    %s109 = sphi 0, %s93
    %s115 = sphi 0, %s117
    %s118 = sphi 0, %s115
    %s119 = sphi 0, %s118
    %s135 = sphi 0, %s119
  $region4: #{series_decomposition.1} parent=0 // loop_header_branch
    %14 = sbr.rel (%p12) target = $region8
  $region5: #{series_decomposition.1} parent=0 // loop_body
    %s16 = ssub.s32 %s11, 1
    %s17 = ssub.s32 %s11, 2
    %s18 = sadd.s32 %s11, 1
    %s20 = sadd.s32 %s19, 1
    %p23 = scmp.eq.s32.totalorder %s11, 1
    %p24 = scmp.ne.s32.totalorder %s19, %s21
    %p25 = scmp.eq.s32.totalorder %s11, 0
    %p26 = por %p24, %p25
    %p27 = scmp.ne.s32.totalorder %s19, %s21
    %p28 = scmp.eq.s32.totalorder %s16, 1
    %p29 = por %p27, %p28
    %p30 = scmp.ne.s32.totalorder %s21, %s22
    %p31 = scmp.eq.s32.totalorder %s16, 0
    %p32 = por %p30, %p31
    %p33 = scmp.ne.s32.totalorder %s21, %s22
    %p34 = scmp.eq.s32.totalorder %s17, 1
    %p35 = por %p33, %p34
    %p37 = scmp.ne.s32.totalorder %s22, %s36
    %p38 = scmp.eq.s32.totalorder %s17, 0
    %p39 = por %p37, %p38
    %s41 = sadd.s32 %s40, 1
    %p44 = scmp.eq.s32.totalorder %s11, 1
    %p45 = scmp.ne.s32.totalorder %s40, %s42
    %p46 = scmp.eq.s32.totalorder %s11, 0
    %p47 = por %p45, %p46
    %p48 = scmp.ne.s32.totalorder %s40, %s42
    %p49 = scmp.eq.s32.totalorder %s16, 1
    %p50 = por %p48, %p49
    %p51 = scmp.ne.s32.totalorder %s42, %s43
    %p52 = scmp.eq.s32.totalorder %s16, 0
    %p53 = por %p51, %p52
    %p54 = scmp.ne.s32.totalorder %s42, %s43
    %p55 = scmp.eq.s32.totalorder %s17, 1
    %p56 = por %p54, %p55
    %p58 = scmp.ne.s32.totalorder %s43, %s57
    %p59 = scmp.eq.s32.totalorder %s17, 0
    %p60 = por %p58, %p59
    %s61 = ssub.s32 %s11, %s18
    %p62 = scmp.eq.s32.totalorder %s61, 0
    %s64 = sadd.s32 %s63, 1
    %s65 = scalar_select %p62, %s63, %s64
    %p68 = pneg %p62
    %p69 = scmp.eq.s32.totalorder %s11, 1
    %p70 = por %p68, %p69
    %p71 = scmp.ne.s32.totalorder %s63, %s66
    %p72 = scmp.eq.s32.totalorder %s11, 0
    %p73 = por %p71, %p72
    %p74 = scmp.ne.s32.totalorder %s63, %s66
    %p75 = scmp.eq.s32.totalorder %s16, 1
    %p76 = por %p74, %p75
    %p77 = scmp.ne.s32.totalorder %s66, %s67
    %p78 = scmp.eq.s32.totalorder %s16, 0
    %p79 = por %p77, %p78
    %p80 = scmp.ne.s32.totalorder %s66, %s67
    %p81 = scmp.eq.s32.totalorder %s17, 1
    %p82 = por %p80, %p81
    %p84 = scmp.ne.s32.totalorder %s67, %s83
    %p85 = scmp.eq.s32.totalorder %s17, 0
    %p86 = por %p84, %p85
    %s87 = ssub.s32 %s11, %s18
    %p88 = scmp.eq.s32.totalorder %s87, 0
    %s90 = sadd.s32 %s89, 1
    %s91 = scalar_select %p88, %s89, %s90
    %p94 = pneg %p88
    %p95 = scmp.eq.s32.totalorder %s11, 1
    %p96 = por %p94, %p95
    %p97 = scmp.ne.s32.totalorder %s89, %s92
    %p98 = scmp.eq.s32.totalorder %s11, 0
    %p99 = por %p97, %p98
    %p100 = scmp.ne.s32.totalorder %s89, %s92
    %p101 = scmp.eq.s32.totalorder %s16, 1
    %p102 = por %p100, %p101
    %p103 = scmp.ne.s32.totalorder %s92, %s93
    %p104 = scmp.eq.s32.totalorder %s16, 0
    %p105 = por %p103, %p104
    %p106 = scmp.ne.s32.totalorder %s92, %s93
    %p107 = scmp.eq.s32.totalorder %s17, 1
    %p108 = por %p106, %p107
    %p110 = scmp.ne.s32.totalorder %s93, %s109
    %p111 = scmp.eq.s32.totalorder %s17, 0
    %p112 = por %p110, %p111
    %s113 = ssub.s32 %s11, %s18
    %p114 = scmp.eq.s32.totalorder %s113, 0
    %s116 = sadd.s32 %s115, 1
    %s117 = scalar_select %p114, %s115, %s116
    %p120 = pneg %p114
    %p121 = scmp.eq.s32.totalorder %s11, 1
    %p122 = por %p120, %p121
    %p123 = scmp.ne.s32.totalorder %s115, %s118
    %p124 = scmp.eq.s32.totalorder %s11, 0
    %p125 = por %p123, %p124
    %p126 = scmp.ne.s32.totalorder %s115, %s118
    %p127 = scmp.eq.s32.totalorder %s16, 1
    %p128 = por %p126, %p127
    %p129 = scmp.ne.s32.totalorder %s118, %s119
    %p130 = scmp.eq.s32.totalorder %s16, 0
    %p131 = por %p129, %p130
    %p132 = scmp.ne.s32.totalorder %s118, %s119
    %p133 = scmp.eq.s32.totalorder %s17, 1
    %p134 = por %p132, %p133
    %p136 = scmp.ne.s32.totalorder %s119, %s135
    %p137 = scmp.eq.s32.totalorder %s17, 0
    %p138 = por %p136, %p137
    %p139 = scmp.le.s32.totalorder 1, %s11
    %p140 = scmp.lt.s32.totalorder %s11, 3
    %p141 = pnand %p139, %p140
    %p142 = pneg %p141
    // Predicated region
    $region9: #{series_decomposition.1} parent=5 // pred_check
      _
    $region10: #{series_decomposition.1} parent=5 // pred_check_branch
      %144 = sbr.rel (%p141) target = $region12
    $region11: #{series_decomposition.1} parent=5 // pred_region
      %s145 = ssub.s32 %s11, 1
      // Predicated region
      $region13: #{series_decomposition.1} parent=11 // pred_check
        %p146 = pneg %p32
      $region14: #{series_decomposition.1} parent=11 // pred_check_branch
        %148 = sbr.rel (%p146) target = $region16
      $region15: #{series_decomposition.1} parent=11 // pred_region
        _
      $region16: #{series_decomposition.1} parent=11 // pred_fallthru
        _
      // Predicated region
      $region17: #{series_decomposition.1} parent=11 // pred_check
        %p149 = pneg %p53
      $region18: #{series_decomposition.1} parent=11 // pred_check_branch
        %151 = sbr.rel (%p149) target = $region20
      $region19: #{series_decomposition.1} parent=11 // pred_region
        _
      $region20: #{series_decomposition.1} parent=11 // pred_fallthru
        _
    $region12: #{series_decomposition.1} parent=5 // pred_fallthru
      _
    %p152 = scmp.lt.s32.totalorder %s11, 2
    // Predicated region
    $region21: #{series_decomposition.1} parent=5 // pred_check
      %p153 = pneg %p152
    $region22: #{series_decomposition.1} parent=5 // pred_check_branch
      %155 = sbr.rel (%p153) target = $region24
    $region23: #{series_decomposition.1} parent=5 // pred_region
      // Predicated region
      $region25: #{series_decomposition.1} parent=23 // pred_check
        %p156 = pneg %p73
      $region26: #{series_decomposition.1} parent=23 // pred_check_branch
        %158 = sbr.rel (%p156) target = $region28
      $region27: #{series_decomposition.1} parent=23 // pred_region
        %p159 = scmp.lt.s32.totalorder %s11, 1
        %s160 = scalar_select %p159, %s11, 1
        %s161 = smul.addr %s160, 12
        %s162 = smul.addr %s161, 8
        %s163 = scalar_lea.vmem %s2, %s162
      $region28: #{series_decomposition.1} parent=23 // pred_fallthru
        _
    $region24: #{series_decomposition.1} parent=5 // pred_fallthru
      _
    %p164 = scmp.le.s32.totalorder 1, %s11
    %p165 = scmp.lt.s32.totalorder %s11, 3
    %p166 = pnand %p164, %p165
    %p167 = pneg %p166
    // Predicated region
    $region29: #{series_decomposition.1} parent=5 // pred_check
      _
    $region30: #{series_decomposition.1} parent=5 // pred_check_branch
      %169 = sbr.rel (%p166) target = $region32
    $region31: #{series_decomposition.1} parent=5 // pred_region
      %s170 = ssub.s32 %s11, 1
      %p171 = pneg %p32
      %p172 = pneg %p29
      %p173 = pneg %p53
      %p174 = pneg %p50
      %p175 = scmp.lt.s32.totalorder %s16, 1
      %s176 = scalar_select %p175, %s16, 1
      %s177 = smul.addr %s176, 12
      %s178 = smul.addr %s177, 8
      %s179 = scalar_lea.vmem %s2, %s178
      %p180 = pneg %p79
      %p181 = pneg %p76
      %p182 = pneg %p105
      %p183 = pneg %p102
      %p184 = scmp.lt.s32.totalorder %s16, 1
      %s185 = scalar_select %p184, %s16, 1
      %s186 = smul.addr %s185, 12
      %s187 = smul.addr %s186, 8
      %s188 = scalar_lea.vmem %s3, %s187
      %p189 = pneg %p131
      %p190 = pneg %p128
      %p191 = scmp.lt.s32.totalorder %s16, 1
      %s192 = scalar_select %p191, %s16, 1
      %s193 = smul.addr %s192, 12
      %s194 = smul.addr %s193, 8
      %s195 = scalar_lea.vmem %s4, %s194
      %p196 = scmp.lt.s32.totalorder %s16, 1
      %s197 = scalar_select %p196, %s16, 1
      %s198 = smul.addr %s197, 12
      %s199 = smul.addr %s198, 8
      %s200 = scalar_lea.vmem %s2, %s199
      %p201 = scmp.lt.s32.totalorder %s16, 1
      %s202 = scalar_select %p201, %s16, 1
      %s203 = smul.addr %s202, 12
      %s204 = smul.addr %s203, 8
      %s205 = scalar_lea.vmem %s3, %s204
      %p206 = scmp.lt.s32.totalorder %s16, 1
      %s207 = scalar_select %p206, %s16, 1
      %s208 = smul.addr %s207, 12
      %s209 = smul.addr %s208, 8
      %s210 = scalar_lea.vmem %s4, %s209
      %v212 = vld [vmem:[%s1] sm:$0xf]
      %v213 = vld [vmem:[%s1 + $0x4] sm:$0xf]
      %v214 = vld [vmem:[%s1 + $0x8] sm:$0xf]
      %v215 = vld [vmem:[%s1 + $0xc] sm:$0xf]
      %v216 = vld [vmem:[%s1 + $0x10] sm:$0xf]
      %v217 = vld [vmem:[%s1 + $0x14] sm:$0xf]
      %v218 = vld [vmem:[%s1 + $0x18] sm:$0xf]
      %v219 = vld [vmem:[%s1 + $0x1c] sm:$0xf]
      %v220 = vld [vmem:[%s1 + $0x20] sm:$0xf]
      %v221 = vld [vmem:[%s1 + $0x24] sm:$0xf]
      %v222 = vld [vmem:[%s1 + $0x28] sm:$0xf]
      %v223 = vld [vmem:[%s1 + $0x2c] sm:$0xf]
      %v224 = vld [vmem:[%s0] sm:$0xf]
      %v225 = vld [vmem:[%s0 + $0x4] sm:$0xf]
      %v226 = vld [vmem:[%s0 + $0x8] sm:$0xf]
      %v227 = vld [vmem:[%s0 + $0xc] sm:$0xf]
      %v228 = vld [vmem:[%s0 + $0x10] sm:$0xf]
      %v229 = vld [vmem:[%s0 + $0x14] sm:$0xf]
      %v230 = vld [vmem:[%s0 + $0x18] sm:$0xf]
      %v231 = vld [vmem:[%s0 + $0x1c] sm:$0xf]
      %v232 = vld [vmem:[%s0 + $0x20] sm:$0xf]
      %v233 = vld [vmem:[%s0 + $0x24] sm:$0xf]
      %v234 = vld [vmem:[%s0 + $0x28] sm:$0xf]
      %v235 = vld [vmem:[%s0 + $0x2c] sm:$0xf]
      %v236 = vld [vmem:[%s200] sm:$0xff]
      %v237 = vld [vmem:[%s200 + $0x8] sm:$0xff]
      %v238 = vld [vmem:[%s200 + $0x10] sm:$0xff]
      %v239 = vld [vmem:[%s200 + $0x18] sm:$0xff]
      %v240 = vld [vmem:[%s200 + $0x20] sm:$0xff]
      %v241 = vld [vmem:[%s200 + $0x28] sm:$0xff]
      %v242 = vld [vmem:[%s200 + $0x30] sm:$0xff]
      %v243 = vld [vmem:[%s200 + $0x38] sm:$0xff]
      %v244 = vld [vmem:[%s200 + $0x40] sm:$0xff]
      %v245 = vld [vmem:[%s200 + $0x48] sm:$0xff]
      %v246 = vld [vmem:[%s200 + $0x50] sm:$0xff]
      %v247 = vld [vmem:[%s200 + $0x58] sm:$0xff]
      %v248 = vpack.c.bf16 %v236, %v236
      %v249 = vpack.c.bf16 %v237, %v237
      %v250 = vpack.c.bf16 %v238, %v238
      %v251 = vpack.c.bf16 %v239, %v239
      %v252 = vpack.c.bf16 %v240, %v240
      %v253 = vpack.c.bf16 %v241, %v241
      %v254 = vpack.c.bf16 %v242, %v242
      %v255 = vpack.c.bf16 %v243, %v243
      %v256 = vpack.c.bf16 %v244, %v244
      %v257 = vpack.c.bf16 %v245, %v245
      %v258 = vpack.c.bf16 %v246, %v246
      %v259 = vpack.c.bf16 %v247, %v247
      %v260 = vunpack.c.l.bf16 %v248
      %v261 = vunpack.c.l.bf16 %v249
      %v262 = vunpack.c.l.bf16 %v250
      %v263 = vunpack.c.l.bf16 %v251
      %v264 = vunpack.c.l.bf16 %v252
      %v265 = vunpack.c.l.bf16 %v253
      %v266 = vunpack.c.l.bf16 %v254
      %v267 = vunpack.c.l.bf16 %v255
      %v268 = vunpack.c.l.bf16 %v256
      %v269 = vunpack.c.l.bf16 %v257
      %v270 = vunpack.c.l.bf16 %v258
      %v271 = vunpack.c.l.bf16 %v259
      %v272 = vsub.f32 %v236, %v260
      %v273 = vsub.f32 %v237, %v261
      %v274 = vsub.f32 %v238, %v262
      %v275 = vsub.f32 %v239, %v263
      %v276 = vsub.f32 %v240, %v264
      %v277 = vsub.f32 %v241, %v265
      %v278 = vsub.f32 %v242, %v266
      %v279 = vsub.f32 %v243, %v267
      %v280 = vsub.f32 %v244, %v268
      %v281 = vsub.f32 %v245, %v269
      %v282 = vsub.f32 %v246, %v270
      %v283 = vsub.f32 %v247, %v271
      %v284 = vpack.c.bf16 %v273, %v272
      %v285 = vpack.c.bf16 %v275, %v274
      %v286 = vpack.c.bf16 %v277, %v276
      %v287 = vpack.c.bf16 %v279, %v278
      %v288 = vpack.c.bf16 %v281, %v280
      %v289 = vpack.c.bf16 %v283, %v282
      %v302 = vunpack.c.l.b16 %v224
      %v303 = vunpack.c.l.b16 %v225
      %v304 = vunpack.c.l.b16 %v226
      %v305 = vunpack.c.l.b16 %v227
      %v306 = vunpack.c.l.b16 %v228
      %v307 = vunpack.c.l.b16 %v229
      %v308 = vunpack.c.l.b16 %v230
      %v309 = vunpack.c.l.b16 %v231
      %v310 = vunpack.c.l.b16 %v232
      %v311 = vunpack.c.l.b16 %v233
      %v312 = vunpack.c.l.b16 %v234
      %v313 = vunpack.c.l.b16 %v235
      %v314 = vpack.c.b16 %v303, %v302
      %v315 = vpack.c.b16 %v305, %v304
      %v316 = vpack.c.b16 %v307, %v306
      %v317 = vpack.c.b16 %v309, %v308
      %v318 = vpack.c.b16 %v311, %v310
      %v319 = vpack.c.b16 %v313, %v312
      %vm320 = vcmask 785408
      %v322 = vsel %vm320, %v314, 0
      %v325 = vsel %vm320, %v315, 0
      %v328 = vsel %vm320, %v316, 0
      %v331 = vsel %vm320, %v317, 0
      %v334 = vsel %vm320, %v318, 0
      %v337 = vsel %vm320, %v319, 0
      %339 = vmatpush.bf16.msra.mxu0 0
      %340 = vmatpush.bf16.msra.mxu0 0
      %341 = vmatpush.bf16.msra.mxu0 %v289
      %342 = vmatpush.bf16.msra.mxu0 %v288
      %343 = vmatpush.bf16.msra.mxu0 %v287
      %344 = vmatpush.bf16.msra.mxu0 %v286
      %345 = vmatpush.bf16.msra.mxu0 %v285
      %346 = vmatpush.bf16.msra.mxu0 %v284
      %347 = vmatmul.bf16.gmra.mxu0 %v322
      %v348 = vpop.f32.mrf.mxu0
      %v349 = vadd.f32 0.0, %v348
      %v350 = vpop.f32.mrf.mxu0
      %v351 = vadd.f32 0.0, %v350
      %352 = vmatmul.bf16.gmra.mxu0 %v325
      %v353 = vpop.f32.mrf.mxu0
      %v354 = vadd.f32 0.0, %v353
      %v355 = vpop.f32.mrf.mxu0
      %v356 = vadd.f32 0.0, %v355
      %357 = vmatmul.bf16.gmra.mxu0 %v328
      %v358 = vpop.f32.mrf.mxu0
      %v359 = vadd.f32 0.0, %v358
      %v360 = vpop.f32.mrf.mxu0
      %v361 = vadd.f32 0.0, %v360
      %362 = vmatmul.bf16.gmra.mxu0 %v331
      %v363 = vpop.f32.mrf.mxu0
      %v364 = vadd.f32 0.0, %v363
      %v365 = vpop.f32.mrf.mxu0
      %v366 = vadd.f32 0.0, %v365
      %367 = vmatmul.bf16.gmra.mxu0 %v334
      %v368 = vpop.f32.mrf.mxu0
      %v369 = vadd.f32 0.0, %v368
      %v370 = vpop.f32.mrf.mxu0
      %v371 = vadd.f32 0.0, %v370
      %372 = vmatmul.bf16.gmra.mxu0 %v337
      %v373 = vpop.f32.mrf.mxu0
      %v374 = vadd.f32 0.0, %v373
      %v375 = vpop.f32.mrf.mxu0
      %v376 = vadd.f32 0.0, %v375
      %377 = vdwg.mxu0
      %v390 = vunpack.c.l.b16 %v248
      %v391 = vunpack.c.l.b16 %v249
      %v392 = vunpack.c.l.b16 %v250
      %v393 = vunpack.c.l.b16 %v251
      %v394 = vunpack.c.l.b16 %v252
      %v395 = vunpack.c.l.b16 %v253
      %v396 = vunpack.c.l.b16 %v254
      %v397 = vunpack.c.l.b16 %v255
      %v398 = vunpack.c.l.b16 %v256
      %v399 = vunpack.c.l.b16 %v257
      %v400 = vunpack.c.l.b16 %v258
      %v401 = vunpack.c.l.b16 %v259
      %v402 = vpack.c.b16 %v391, %v390
      %v403 = vpack.c.b16 %v393, %v392
      %v404 = vpack.c.b16 %v395, %v394
      %v405 = vpack.c.b16 %v397, %v396
      %v406 = vpack.c.b16 %v399, %v398
      %v407 = vpack.c.b16 %v401, %v400
      %414 = vmatpush.bf16.msra.mxu0 0
      %415 = vmatpush.bf16.msra.mxu0 0
      %416 = vmatpush.bf16.msra.mxu0 %v407
      %417 = vmatpush.bf16.msra.mxu0 %v406
      %418 = vmatpush.bf16.msra.mxu0 %v405
      %419 = vmatpush.bf16.msra.mxu0 %v404
      %420 = vmatpush.bf16.msra.mxu0 %v403
      %421 = vmatpush.bf16.msra.mxu0 %v402
      %422 = vmatmul.bf16.gmra.mxu0 %v322
      %v423 = vpop.f32.mrf.mxu0
      %v424 = vadd.f32 %v349, %v423
      %v425 = vpop.f32.mrf.mxu0
      %v426 = vadd.f32 %v351, %v425
      %427 = vmatmul.bf16.gmra.mxu0 %v325
      %v428 = vpop.f32.mrf.mxu0
      %v429 = vadd.f32 %v354, %v428
      %v430 = vpop.f32.mrf.mxu0
      %v431 = vadd.f32 %v356, %v430
      %432 = vmatmul.bf16.gmra.mxu0 %v328
      %v433 = vpop.f32.mrf.mxu0
      %v434 = vadd.f32 %v359, %v433
      %v435 = vpop.f32.mrf.mxu0
      %v436 = vadd.f32 %v361, %v435
      %437 = vmatmul.bf16.gmra.mxu0 %v331
      %v438 = vpop.f32.mrf.mxu0
      %v439 = vadd.f32 %v364, %v438
      %v440 = vpop.f32.mrf.mxu0
      %v441 = vadd.f32 %v366, %v440
      %442 = vmatmul.bf16.gmra.mxu0 %v334
      %v443 = vpop.f32.mrf.mxu0
      %v444 = vadd.f32 %v369, %v443
      %v445 = vpop.f32.mrf.mxu0
      %v446 = vadd.f32 %v371, %v445
      %447 = vmatmul.bf16.gmra.mxu0 %v337
      %v448 = vpop.f32.mrf.mxu0
      %v449 = vadd.f32 %v374, %v448
      %v450 = vpop.f32.mrf.mxu0
      %v451 = vadd.f32 %v376, %v450
      %452 = vdwg.mxu0
      %v465 = vunpack.c.l.b16 %v212
      %v466 = vunpack.c.l.b16 %v213
      %v467 = vunpack.c.l.b16 %v214
      %v468 = vunpack.c.l.b16 %v215
      %v469 = vunpack.c.l.b16 %v216
      %v470 = vunpack.c.l.b16 %v217
      %v471 = vunpack.c.l.b16 %v218
      %v472 = vunpack.c.l.b16 %v219
      %v473 = vunpack.c.l.b16 %v220
      %v474 = vunpack.c.l.b16 %v221
      %v475 = vunpack.c.l.b16 %v222
      %v476 = vunpack.c.l.b16 %v223
      %v477 = vpack.c.b16 %v466, %v465
      %v478 = vpack.c.b16 %v468, %v467
      %v479 = vpack.c.b16 %v470, %v469
      %v480 = vpack.c.b16 %v472, %v471
      %v481 = vpack.c.b16 %v474, %v473
      %v482 = vpack.c.b16 %v476, %v475
      %v484 = vsel %vm320, %v477, 0
      %v487 = vsel %vm320, %v478, 0
      %v490 = vsel %vm320, %v479, 0
      %v493 = vsel %vm320, %v480, 0
      %v496 = vsel %vm320, %v481, 0
      %v499 = vsel %vm320, %v482, 0
      %501 = vmatpush.bf16.msra.mxu0 0
      %502 = vmatpush.bf16.msra.mxu0 0
      %503 = vmatpush.bf16.msra.mxu0 %v407
      %504 = vmatpush.bf16.msra.mxu0 %v406
      %505 = vmatpush.bf16.msra.mxu0 %v405
      %506 = vmatpush.bf16.msra.mxu0 %v404
      %507 = vmatpush.bf16.msra.mxu0 %v403
      %508 = vmatpush.bf16.msra.mxu0 %v402
      %509 = vmatmul.bf16.gmra.mxu0 %v484
      %v510 = vpop.f32.mrf.mxu0
      %v511 = vadd.f32 0.0, %v510
      %v512 = vpop.f32.mrf.mxu0
      %v513 = vadd.f32 0.0, %v512
      %514 = vmatmul.bf16.gmra.mxu0 %v487
      %v515 = vpop.f32.mrf.mxu0
      %v516 = vadd.f32 0.0, %v515
      %v517 = vpop.f32.mrf.mxu0
      %v518 = vadd.f32 0.0, %v517
      %519 = vmatmul.bf16.gmra.mxu0 %v490
      %v520 = vpop.f32.mrf.mxu0
      %v521 = vadd.f32 0.0, %v520
      %v522 = vpop.f32.mrf.mxu0
      %v523 = vadd.f32 0.0, %v522
      %524 = vmatmul.bf16.gmra.mxu0 %v493
      %v525 = vpop.f32.mrf.mxu0
      %v526 = vadd.f32 0.0, %v525
      %v527 = vpop.f32.mrf.mxu0
      %v528 = vadd.f32 0.0, %v527
      %529 = vmatmul.bf16.gmra.mxu0 %v496
      %v530 = vpop.f32.mrf.mxu0
      %v531 = vadd.f32 0.0, %v530
      %v532 = vpop.f32.mrf.mxu0
      %v533 = vadd.f32 0.0, %v532
      %534 = vmatmul.bf16.gmra.mxu0 %v499
      %v535 = vpop.f32.mrf.mxu0
      %v536 = vadd.f32 0.0, %v535
      %v537 = vpop.f32.mrf.mxu0
      %v538 = vadd.f32 0.0, %v537
      %539 = vdwg.mxu0
      %v540 = vadd.f32 %v424, %v511
      %v541 = vadd.f32 %v426, %v513
      %v542 = vadd.f32 %v429, %v516
      %v543 = vadd.f32 %v431, %v518
      %v544 = vadd.f32 %v434, %v521
      %v545 = vadd.f32 %v436, %v523
      %v546 = vadd.f32 %v439, %v526
      %v547 = vadd.f32 %v441, %v528
      %v548 = vadd.f32 %v444, %v531
      %v549 = vadd.f32 %v446, %v533
      %v550 = vadd.f32 %v449, %v536
      %v551 = vadd.f32 %v451, %v538
      %vm552 = vcmask 64512
      %553 = vst.msk [vmem:[%s210] sm:$0xff] %vm552, %v540
      %554 = vst.msk [vmem:[%s210 + $0x8] sm:$0xff] %vm552, %v541
      %555 = vst.msk [vmem:[%s210 + $0x10] sm:$0xff] %vm552, %v542
      %556 = vst.msk [vmem:[%s210 + $0x18] sm:$0xff] %vm552, %v543
      %557 = vst.msk [vmem:[%s210 + $0x20] sm:$0xff] %vm552, %v544
      %558 = vst.msk [vmem:[%s210 + $0x28] sm:$0xff] %vm552, %v545
      %559 = vst.msk [vmem:[%s210 + $0x30] sm:$0xff] %vm552, %v546
      %560 = vst.msk [vmem:[%s210 + $0x38] sm:$0xff] %vm552, %v547
      %561 = vst.msk [vmem:[%s210 + $0x40] sm:$0xff] %vm552, %v548
      %562 = vst.msk [vmem:[%s210 + $0x48] sm:$0xff] %vm552, %v549
      %563 = vst.msk [vmem:[%s210 + $0x50] sm:$0xff] %vm552, %v550
      %564 = vst.msk [vmem:[%s210 + $0x58] sm:$0xff] %vm552, %v551
      %v565 = vsub.f32 %v236, %v540
      %v566 = vsub.f32 %v237, %v541
      %v567 = vsub.f32 %v238, %v542
      %v568 = vsub.f32 %v239, %v543
      %v569 = vsub.f32 %v240, %v544
      %v570 = vsub.f32 %v241, %v545
      %v571 = vsub.f32 %v242, %v546
      %v572 = vsub.f32 %v243, %v547
      %v573 = vsub.f32 %v244, %v548
      %v574 = vsub.f32 %v245, %v549
      %v575 = vsub.f32 %v246, %v550
      %v576 = vsub.f32 %v247, %v551
      %577 = vst.msk [vmem:[%s205] sm:$0xff] %vm552, %v565
      %578 = vst.msk [vmem:[%s205 + $0x8] sm:$0xff] %vm552, %v566
      %579 = vst.msk [vmem:[%s205 + $0x10] sm:$0xff] %vm552, %v567
      %580 = vst.msk [vmem:[%s205 + $0x18] sm:$0xff] %vm552, %v568
      %581 = vst.msk [vmem:[%s205 + $0x20] sm:$0xff] %vm552, %v569
      %582 = vst.msk [vmem:[%s205 + $0x28] sm:$0xff] %vm552, %v570
      %583 = vst.msk [vmem:[%s205 + $0x30] sm:$0xff] %vm552, %v571
      %584 = vst.msk [vmem:[%s205 + $0x38] sm:$0xff] %vm552, %v572
      %585 = vst.msk [vmem:[%s205 + $0x40] sm:$0xff] %vm552, %v573
      %586 = vst.msk [vmem:[%s205 + $0x48] sm:$0xff] %vm552, %v574
      %587 = vst.msk [vmem:[%s205 + $0x50] sm:$0xff] %vm552, %v575
      %588 = vst.msk [vmem:[%s205 + $0x58] sm:$0xff] %vm552, %v576
      %p589 = scmp.lt.s32.totalorder %s16, 1
      %s590 = scalar_select %p589, %s16, 1
      %s591 = smul.addr %s590, 12
      %s592 = smul.addr %s591, 8
      %s593 = scalar_lea.vmem %s3, %s592
      %p594 = scmp.lt.s32.totalorder %s16, 1
      %s595 = scalar_select %p594, %s16, 1
      %s596 = smul.addr %s595, 12
      %s597 = smul.addr %s596, 8
      %s598 = scalar_lea.vmem %s4, %s597
      // Predicated region
      $region33: #{series_decomposition.1} parent=31 // pred_check
        %p599 = pneg %p102
      $region34: #{series_decomposition.1} parent=31 // pred_check_branch
        %601 = sbr.rel (%p599) target = $region36
      $region35: #{series_decomposition.1} parent=31 // pred_region
        _
      $region36: #{series_decomposition.1} parent=31 // pred_fallthru
        _
      // Predicated region
      $region37: #{series_decomposition.1} parent=31 // pred_check
        %p602 = pneg %p128
      $region38: #{series_decomposition.1} parent=31 // pred_check_branch
        %604 = sbr.rel (%p602) target = $region40
      $region39: #{series_decomposition.1} parent=31 // pred_region
        _
      $region40: #{series_decomposition.1} parent=31 // pred_fallthru
        _
    $region32: #{series_decomposition.1} parent=5 // pred_fallthru
      _
    %p605 = scmp.le.s32.totalorder 2, %s11
    // Predicated region
    $region41: #{series_decomposition.1} parent=5 // pred_check
      %p606 = pneg %p605
    $region42: #{series_decomposition.1} parent=5 // pred_check_branch
      %608 = sbr.rel (%p606) target = $region44
    $region43: #{series_decomposition.1} parent=5 // pred_region
      %s609 = ssub.s32 %s11, 2
      // Predicated region
      $region45: #{series_decomposition.1} parent=43 // pred_check
        %p610 = pneg %p108
      $region46: #{series_decomposition.1} parent=43 // pred_check_branch
        %612 = sbr.rel (%p610) target = $region48
      $region47: #{series_decomposition.1} parent=43 // pred_region
        %p613 = scmp.lt.s32.totalorder %s17, 1
        %s614 = scalar_select %p613, %s17, 1
        %s615 = smul.addr %s614, 12
        %s616 = smul.addr %s615, 8
        %s617 = scalar_lea.vmem %s3, %s616
      $region48: #{series_decomposition.1} parent=43 // pred_fallthru
        _
      // Predicated region
      $region49: #{series_decomposition.1} parent=43 // pred_check
        %p618 = pneg %p134
      $region50: #{series_decomposition.1} parent=43 // pred_check_branch
        %620 = sbr.rel (%p618) target = $region52
      $region51: #{series_decomposition.1} parent=43 // pred_region
        %p621 = scmp.lt.s32.totalorder %s17, 1
        %s622 = scalar_select %p621, %s17, 1
        %s623 = smul.addr %s622, 12
        %s624 = smul.addr %s623, 8
        %s625 = scalar_lea.vmem %s4, %s624
      $region52: #{series_decomposition.1} parent=43 // pred_fallthru
        _
    $region44: #{series_decomposition.1} parent=5 // pred_fallthru
      _
  $region6: #{series_decomposition.1} parent=0 // loop_footer
    %s15 = sadd.s32 1, %s11
  $region7: #{series_decomposition.1} parent=0 // loop_footer_branch
    %10 = sbr.rel target = $region3
  $region8: #{series_decomposition.1} parent=0 // loop_exit
    _

</llo_original>
